<compile_context>
chip_gen: v7x
topology: tpu7x:2x2x1
jax: 0.10.0
libtpu: 0.0.40
codegen_flags: <defaults>
</compile_context>

<pallas_src>
import jax
import jax.numpy as jnp
from jax.experimental import pallas as pl
from jax.experimental.pallas import tpu as pltpu


def add_kernel(a_ref, b_ref, o_ref):
    # Single full-tile elementwise add on the VPU.
    o_ref[...] = a_ref[...] + b_ref[...]


def _pallas_add_impl(x384, x369):
    assert x384.shape == x369.shape
    assert x384.dtype == x369.dtype
    orig_shape = x384.shape

    # Metadata-only collapse of (1, 272, 7, 7) -> (272, 49); a contiguous
    # row-major reshape inside jit lowers to a bitcast (no data movement).
    rows = orig_shape[0] * orig_shape[1]
    cols = orig_shape[2] * orig_shape[3]
    a2 = x384.reshape(rows, cols)
    b2 = x369.reshape(rows, cols)

    out2 = pl.pallas_call(
        add_kernel,
        out_shape=jax.ShapeDtypeStruct((rows, cols), x384.dtype),
        in_specs=[
            pl.BlockSpec(memory_space=pltpu.MemorySpace.VMEM),
            pl.BlockSpec(memory_space=pltpu.MemorySpace.VMEM),
        ],
        out_specs=pl.BlockSpec(memory_space=pltpu.MemorySpace.VMEM),
    )(a2, b2)

    return out2.reshape(orig_shape)


# Jit the wrapper so the (bitcast) reshapes fold around the custom call.
pallas_add = jax.jit(_pallas_add_impl)


if __name__ == "__main__":
    key = jax.random.PRNGKey(0)
    k1, k2 = jax.random.split(key)
    # Shapes implied by the module's forward: [1, 272, 7, 7]
    x369 = jax.random.normal(k1, (1, 272, 7, 7), dtype=jnp.float32)
    x384 = jax.random.normal(k2, (1, 272, 7, 7), dtype=jnp.float32)

    out = pallas_add(x384, x369)
    jax.block_until_ready(out)

    ref = x384 + x369
    assert out.shape == ref.shape
    assert jnp.allclose(out, ref, atol=1e-6, rtol=1e-6)
    print("KERNEL_OK")
</pallas_src>

<mosaic_0001>
module attributes {stable_mosaic.version = 11 : i64} {
  func.func @add_kernel(%arg0: memref<272x49xf32, #tpu.memory_space<vmem>>, %arg1: memref<272x49xf32, #tpu.memory_space<vmem>>, %arg2: memref<272x49xf32, #tpu.memory_space<vmem>>) attributes {dimension_semantics = [], scalar_prefetch = 0 : i64, scratch_operands = 0 : i64, tpu.core_type = #tpu.core_type<tc>} {
    %c0 = arith.constant 0 : index
    %c0_0 = arith.constant 0 : index
    %0 = vector.load %arg0[%c0, %c0_0] : memref<272x49xf32, #tpu.memory_space<vmem>>, vector<272x49xf32>
    %c0_1 = arith.constant 0 : index
    %c0_2 = arith.constant 0 : index
    %1 = vector.load %arg1[%c0_1, %c0_2] : memref<272x49xf32, #tpu.memory_space<vmem>>, vector<272x49xf32>
    %2 = arith.addf %0, %1 : vector<272x49xf32>
    %c0_3 = arith.constant 0 : index
    %c0_4 = arith.constant 0 : index
    %3 = vector.load %arg2[%c0_3, %c0_4] : memref<272x49xf32, #tpu.memory_space<vmem>>, vector<272x49xf32>
    tpu.vector_store %arg2[%c0_3, %c0_4], %2 {strides = array<i32>} : memref<272x49xf32, #tpu.memory_space<vmem>>, vector<272x49xf32>,
    return
  }
}

</mosaic_0001>

<llo_original>
// kernel: _pallas_add_impl.1
$region0: #{_pallas_add_impl.1}
  #allocation0 [shape = 'u32[]', space=smem, size = 0x4, offset = 0x4, fixed_abs, tag = 'smem constant byte address 0x4 - core index']
  #allocation1 [shape = 'u32[144,128]{1,0:T(1,128)}', space=vmem, size = 0x12000, scoped, tag = 'internal scratch']
  %s0 = inlined_call_operand.vmem [shape: f32[272,49], index: 0, kind: input, shape index: {}]
  %s1 = inlined_call_operand.vmem [shape: f32[272,49], index: 1, kind: input, shape index: {}]
  %s2 = inlined_call_operand.vmem [shape: f32[272,49], index: 2, kind: output, shape index: {}]
  %s3 = sld [smem:[#allocation0]]
  $region18: #{_pallas_add_impl.1} parent=0
    _
  %s5 = ssub.s32 1, %s3
  %s6 = scalar_select 0, %s5, %s3
  // Predicated region
  $region2: #{_pallas_add_impl.1} parent=0 // pred_check
    _
  $region3: #{_pallas_add_impl.1} parent=0 // pred_check_branch
    %8 = sbr.rel (0) target = $region5
  $region4: #{_pallas_add_impl.1} parent=0 // pred_region
    _
  $region5: #{_pallas_add_impl.1} parent=0 // pred_fallthru
    _
  // Predicated region
  $region6: #{_pallas_add_impl.1} parent=0 // pred_check
    _
  $region7: #{_pallas_add_impl.1} parent=0 // pred_check_branch
    %10 = sbr.rel (0) target = $region9
  $region8: #{_pallas_add_impl.1} parent=0 // pred_region
    _
  $region9: #{_pallas_add_impl.1} parent=0 // pred_fallthru
    _
  %v11 = vld [vmem:[%s0] sm:$0xff]
  %v12 = vld [vmem:[%s0 + $0x8] sm:$0xff]
  %v13 = vld [vmem:[%s0 + $0x10] sm:$0xff]
  %v14 = vld [vmem:[%s0 + $0x18] sm:$0xff]
  %v15 = vld [vmem:[%s0 + $0x20] sm:$0xff]
  %v16 = vld [vmem:[%s0 + $0x28] sm:$0xff]
  %v17 = vld [vmem:[%s0 + $0x30] sm:$0xff]
  %v18 = vld [vmem:[%s0 + $0x38] sm:$0xff]
  %v19 = vld [vmem:[%s0 + $0x40] sm:$0xff]
  %v20 = vld [vmem:[%s0 + $0x48] sm:$0xff]
  %v21 = vld [vmem:[%s0 + $0x50] sm:$0xff]
  %v22 = vld [vmem:[%s0 + $0x58] sm:$0xff]
  %v23 = vld [vmem:[%s0 + $0x60] sm:$0xff]
  %v24 = vld [vmem:[%s0 + $0x68] sm:$0xff]
  %v25 = vld [vmem:[%s0 + $0x70] sm:$0xff]
  %v26 = vld [vmem:[%s0 + $0x78] sm:$0xff]
  %v27 = vld [vmem:[%s0 + $0x80] sm:$0xff]
  %v28 = vld [vmem:[%s0 + $0x88] sm:$0xff]
  %v29 = vld [vmem:[%s0 + $0x90] sm:$0xff]
  %v30 = vld [vmem:[%s0 + $0x98] sm:$0xff]
  %v31 = vld [vmem:[%s0 + $0xa0] sm:$0xff]
  %v32 = vld [vmem:[%s0 + $0xa8] sm:$0xff]
  %v33 = vld [vmem:[%s0 + $0xb0] sm:$0xff]
  %v34 = vld [vmem:[%s0 + $0xb8] sm:$0xff]
  %v35 = vld [vmem:[%s0 + $0xc0] sm:$0xff]
  %v36 = vld [vmem:[%s0 + $0xc8] sm:$0xff]
  %v37 = vld [vmem:[%s0 + $0xd0] sm:$0xff]
  %v38 = vld [vmem:[%s0 + $0xd8] sm:$0xff]
  %v39 = vld [vmem:[%s0 + $0xe0] sm:$0xff]
  %v40 = vld [vmem:[%s0 + $0xe8] sm:$0xff]
  %v41 = vld [vmem:[%s0 + $0xf0] sm:$0xff]
  %v42 = vld [vmem:[%s0 + $0xf8] sm:$0xff]
  %v43 = vld [vmem:[%s0 + $0x100] sm:$0xff]
  %v44 = vld [vmem:[%s0 + $0x108] sm:$0xff]
  %v45 = vld [vmem:[%s1] sm:$0xff]
  %v46 = vld [vmem:[%s1 + $0x8] sm:$0xff]
  %v47 = vld [vmem:[%s1 + $0x10] sm:$0xff]
  %v48 = vld [vmem:[%s1 + $0x18] sm:$0xff]
  %v49 = vld [vmem:[%s1 + $0x20] sm:$0xff]
  %v50 = vld [vmem:[%s1 + $0x28] sm:$0xff]
  %v51 = vld [vmem:[%s1 + $0x30] sm:$0xff]
  %v52 = vld [vmem:[%s1 + $0x38] sm:$0xff]
  %v53 = vld [vmem:[%s1 + $0x40] sm:$0xff]
  %v54 = vld [vmem:[%s1 + $0x48] sm:$0xff]
  %v55 = vld [vmem:[%s1 + $0x50] sm:$0xff]
  %v56 = vld [vmem:[%s1 + $0x58] sm:$0xff]
  %v57 = vld [vmem:[%s1 + $0x60] sm:$0xff]
  %v58 = vld [vmem:[%s1 + $0x68] sm:$0xff]
  %v59 = vld [vmem:[%s1 + $0x70] sm:$0xff]
  %v60 = vld [vmem:[%s1 + $0x78] sm:$0xff]
  %v61 = vld [vmem:[%s1 + $0x80] sm:$0xff]
  %v62 = vld [vmem:[%s1 + $0x88] sm:$0xff]
  %v63 = vld [vmem:[%s1 + $0x90] sm:$0xff]
  %v64 = vld [vmem:[%s1 + $0x98] sm:$0xff]
  %v65 = vld [vmem:[%s1 + $0xa0] sm:$0xff]
  %v66 = vld [vmem:[%s1 + $0xa8] sm:$0xff]
  %v67 = vld [vmem:[%s1 + $0xb0] sm:$0xff]
  %v68 = vld [vmem:[%s1 + $0xb8] sm:$0xff]
  %v69 = vld [vmem:[%s1 + $0xc0] sm:$0xff]
  %v70 = vld [vmem:[%s1 + $0xc8] sm:$0xff]
  %v71 = vld [vmem:[%s1 + $0xd0] sm:$0xff]
  %v72 = vld [vmem:[%s1 + $0xd8] sm:$0xff]
  %v73 = vld [vmem:[%s1 + $0xe0] sm:$0xff]
  %v74 = vld [vmem:[%s1 + $0xe8] sm:$0xff]
  %v75 = vld [vmem:[%s1 + $0xf0] sm:$0xff]
  %v76 = vld [vmem:[%s1 + $0xf8] sm:$0xff]
  %v77 = vld [vmem:[%s1 + $0x100] sm:$0xff]
  %v78 = vld [vmem:[%s1 + $0x108] sm:$0xff]
  %v79 = vadd.f32 %v11, %v45
  %v80 = vadd.f32 %v12, %v46
  %v81 = vadd.f32 %v13, %v47
  %v82 = vadd.f32 %v14, %v48
  %v83 = vadd.f32 %v15, %v49
  %v84 = vadd.f32 %v16, %v50
  %v85 = vadd.f32 %v17, %v51
  %v86 = vadd.f32 %v18, %v52
  %v87 = vadd.f32 %v19, %v53
  %v88 = vadd.f32 %v20, %v54
  %v89 = vadd.f32 %v21, %v55
  %v90 = vadd.f32 %v22, %v56
  %v91 = vadd.f32 %v23, %v57
  %v92 = vadd.f32 %v24, %v58
  %v93 = vadd.f32 %v25, %v59
  %v94 = vadd.f32 %v26, %v60
  %v95 = vadd.f32 %v27, %v61
  %v96 = vadd.f32 %v28, %v62
  %v97 = vadd.f32 %v29, %v63
  %v98 = vadd.f32 %v30, %v64
  %v99 = vadd.f32 %v31, %v65
  %v100 = vadd.f32 %v32, %v66
  %v101 = vadd.f32 %v33, %v67
  %v102 = vadd.f32 %v34, %v68
  %v103 = vadd.f32 %v35, %v69
  %v104 = vadd.f32 %v36, %v70
  %v105 = vadd.f32 %v37, %v71
  %v106 = vadd.f32 %v38, %v72
  %v107 = vadd.f32 %v39, %v73
  %v108 = vadd.f32 %v40, %v74
  %v109 = vadd.f32 %v41, %v75
  %v110 = vadd.f32 %v42, %v76
  %v111 = vadd.f32 %v43, %v77
  %v112 = vadd.f32 %v44, %v78
  %vm113 = vcmask 400384
  %114 = vst.msk [vmem:[%s2] sm:$0xff] %vm113, %v79
  %115 = vst.msk [vmem:[%s2 + $0x8] sm:$0xff] %vm113, %v80
  %116 = vst.msk [vmem:[%s2 + $0x10] sm:$0xff] %vm113, %v81
  %117 = vst.msk [vmem:[%s2 + $0x18] sm:$0xff] %vm113, %v82
  %118 = vst.msk [vmem:[%s2 + $0x20] sm:$0xff] %vm113, %v83
  %119 = vst.msk [vmem:[%s2 + $0x28] sm:$0xff] %vm113, %v84
  %120 = vst.msk [vmem:[%s2 + $0x30] sm:$0xff] %vm113, %v85
  %121 = vst.msk [vmem:[%s2 + $0x38] sm:$0xff] %vm113, %v86
  %122 = vst.msk [vmem:[%s2 + $0x40] sm:$0xff] %vm113, %v87
  %123 = vst.msk [vmem:[%s2 + $0x48] sm:$0xff] %vm113, %v88
  %124 = vst.msk [vmem:[%s2 + $0x50] sm:$0xff] %vm113, %v89
  %125 = vst.msk [vmem:[%s2 + $0x58] sm:$0xff] %vm113, %v90
  %126 = vst.msk [vmem:[%s2 + $0x60] sm:$0xff] %vm113, %v91
  %127 = vst.msk [vmem:[%s2 + $0x68] sm:$0xff] %vm113, %v92
  %128 = vst.msk [vmem:[%s2 + $0x70] sm:$0xff] %vm113, %v93
  %129 = vst.msk [vmem:[%s2 + $0x78] sm:$0xff] %vm113, %v94
  %130 = vst.msk [vmem:[%s2 + $0x80] sm:$0xff] %vm113, %v95
  %131 = vst.msk [vmem:[%s2 + $0x88] sm:$0xff] %vm113, %v96
  %132 = vst.msk [vmem:[%s2 + $0x90] sm:$0xff] %vm113, %v97
  %133 = vst.msk [vmem:[%s2 + $0x98] sm:$0xff] %vm113, %v98
  %134 = vst.msk [vmem:[%s2 + $0xa0] sm:$0xff] %vm113, %v99
  %135 = vst.msk [vmem:[%s2 + $0xa8] sm:$0xff] %vm113, %v100
  %136 = vst.msk [vmem:[%s2 + $0xb0] sm:$0xff] %vm113, %v101
  %137 = vst.msk [vmem:[%s2 + $0xb8] sm:$0xff] %vm113, %v102
  %138 = vst.msk [vmem:[%s2 + $0xc0] sm:$0xff] %vm113, %v103
  %139 = vst.msk [vmem:[%s2 + $0xc8] sm:$0xff] %vm113, %v104
  %140 = vst.msk [vmem:[%s2 + $0xd0] sm:$0xff] %vm113, %v105
  %141 = vst.msk [vmem:[%s2 + $0xd8] sm:$0xff] %vm113, %v106
  %142 = vst.msk [vmem:[%s2 + $0xe0] sm:$0xff] %vm113, %v107
  %143 = vst.msk [vmem:[%s2 + $0xe8] sm:$0xff] %vm113, %v108
  %144 = vst.msk [vmem:[%s2 + $0xf0] sm:$0xff] %vm113, %v109
  %145 = vst.msk [vmem:[%s2 + $0xf8] sm:$0xff] %vm113, %v110
  %146 = vst.msk [vmem:[%s2 + $0x100] sm:$0xff] %vm113, %v111
  %147 = vst.msk [vmem:[%s2 + $0x108] sm:$0xff] %vm113, %v112
  // Predicated region
  $region10: #{_pallas_add_impl.1} parent=0 // pred_check
    _
  $region11: #{_pallas_add_impl.1} parent=0 // pred_check_branch
    %149 = sbr.rel (0) target = $region13
  $region12: #{_pallas_add_impl.1} parent=0 // pred_region
    _
  $region13: #{_pallas_add_impl.1} parent=0 // pred_fallthru
    _
  // Predicated region
  $region14: #{_pallas_add_impl.1} parent=0 // pred_check
    _
  $region15: #{_pallas_add_impl.1} parent=0 // pred_check_branch
    %151 = sbr.rel (0) target = $region17
  $region16: #{_pallas_add_impl.1} parent=0 // pred_region
    _
  $region17: #{_pallas_add_impl.1} parent=0 // pred_fallthru
    _

</llo_original>
